<compile_context>
chip_gen: v6e
topology: v6e:2x2x1
jax: 0.10.0
libtpu: 0.0.40
codegen_flags: <defaults>
</compile_context>

<pallas_src>
import itertools

import numpy as np
import jax
import jax.numpy as jnp
from jax import lax
from jax.experimental import pallas as pl
from jax.experimental.pallas import tpu as pltpu

try:  # prefer scipy's O(K^3) Hungarian solver when available
    from scipy.optimize import linear_sum_assignment as _scipy_lsa
except Exception:  # pragma: no cover
    _scipy_lsa = None

_LANE = 128


def _vmem_plan():
    """(per-input-block byte target, scoped-VMEM limit), tuned per generation.

    v5e/v6e have 128 MiB physical VMEM -> fatter blocks + 64 MiB scoped limit.
    v7x has 64 MiB physical (32 MiB scoped default) -> stay conservative.
    Falls back to the conservative plan if the hardware query is unavailable.
    """
    phys = None
    try:
        phys = getattr(pltpu.get_tpu_info(), "vmem_capacity_bytes", None)
    except Exception:
        phys = None
    if phys is not None and phys >= 128 * 1024 * 1024:
        return 6 * 1024 * 1024, 64 * 1024 * 1024  # v5e / v6e
    return 2 * 1024 * 1024, 32 * 1024 * 1024      # v7x / unknown


# ---------------------------------------------------------------------------
# Kernel 1: per-batch L1 cost matrices
#   m_ref, g_ref : (Bt, K, Np)   block of batches' flattened maps
#   cost_ref     : (Bt, K, K)    cost[b, i, j] = sum_n |M[b,i,n] - G[b,j,n]|
# ---------------------------------------------------------------------------
def _cost_kernel(m_ref, g_ref, cost_ref):
    k = m_ref.shape[1]
    # Cast the (reused every row) G block to f32 once; the |diff| accumulation
    # stays in f32 even when inputs arrive as bf16 (halved HBM traffic).
    g = g_ref[...].astype(jnp.float32)                        # (Bt, K, Np)

    def one_row(i):
        mi = m_ref[:, pl.ds(i, 1), :].astype(jnp.float32)     # (Bt, 1, Np)
        # TODO(synk): on v7x route this N-reduction through the MXU (ones-
        # vector contraction) to free XLU slots; kept on the plain XLU sum
        # here since the kernel is HBM-bound on v5e/v6e and this lowering is
        # the safest.
        row = jnp.sum(jnp.abs(mi - g), axis=-1)               # (Bt, K)
        cost_ref[:, pl.ds(i, 1), :] = row[:, None, :]         # (Bt, 1, K)

    if k <= 8:
        for i in range(k):          # short static unroll: static row stores
            one_row(i)
    else:
        pl.loop(0, k)(one_row)      # scheduler-visible loop for large K


def _pairwise_l1_cost(Mf, Gf, target_bytes, vmem_limit):
    """Mf, Gf: (B, K, Np) -> (B, K, K) f32 per-batch L1 cost matrices."""
    B, K, Np = Mf.shape
    itemsize = jnp.dtype(Mf.dtype).itemsize
    per_batch = max(K * Np * itemsize, 1)
    bt = max(1, min(B, target_bytes // per_batch))
    bt = min(bt, max(1, (B + 1) // 2))   # >=2 grid steps when B > 1 (v7x 2 TCs)
    grid = (pl.cdiv(B, bt),)             # cdiv grid: no Bt-divides-B cliff
    return pl.pallas_call(
        _cost_kernel,
        out_shape=jax.ShapeDtypeStruct((B, K, K), jnp.float32),
        grid=grid,
        in_specs=[
            pl.BlockSpec((bt, K, Np), lambda b: (b, 0, 0)),
            pl.BlockSpec((bt, K, Np), lambda b: (b, 0, 0)),
        ],
        out_specs=pl.BlockSpec((bt, K, K), lambda b: (b, 0, 0)),
        compiler_params=pltpu.CompilerParams(
            dimension_semantics=("parallel",),
            vmem_limit_bytes=vmem_limit,
        ),
    )(Mf, Gf)


# ---------------------------------------------------------------------------
# Kernel 2: BCE partial sums over matched rows, one grid step per Bt batches.
#   tgt_ref : (B*K,) int32 SMEM (scalar prefetch): matched G row (local to its
#             batch) for every M row, flat over (batch, row).
#   m_ref   : (Bt, K, Np)  prediction maps.
#   g_ref   : (Bt, K, Np)  gaze maps (un-permuted; permutation applied in-VMEM
#             via dynamic-slice row reads -- no XLA gather / per-row HBM DMA).
#   out_ref : (1, 1, Np)   f32 lane-dense per-block partial sums.
# ---------------------------------------------------------------------------
def _bce_block_kernel(tgt_ref, m_ref, g_ref, out_ref):
    bt, k, npad = m_ref.shape
    blk = pl.program_id(0)

    def body(rr, acc):
        bb = rr // k                                    # batch within the block
        i = rr % k                                      # prediction row
        j = tgt_ref[(blk * bt + bb) * k + i]            # matched gaze row
        m = m_ref[pl.ds(bb, 1), pl.ds(i, 1), :].astype(jnp.float32)   # (1,1,Np)
        g = g_ref[pl.ds(bb, 1), pl.ds(j, 1), :].astype(jnp.float32)   # (1,1,Np)
        # nn.BCELoss clamps the log terms at -100; clamp *before* the products
        # (avoids 0 * -inf NaNs; also makes zero-padded lanes contribute 0).
        # Exactly 2 EUP transcendentals per element; everything else on VPU.
        log_m = jnp.maximum(jnp.log(m), -100.0)
        log_1m = jnp.maximum(jnp.log(1.0 - m), -100.0)
        return acc - (g * log_m + (1.0 - g) * log_1m)

    out_ref[...] = lax.fori_loop(
        0, bt * k, body, jnp.zeros((1, 1, npad), jnp.float32))


def _bce_mean_matched(Mf, Gf, tgt_flat, n_valid, target_bytes, vmem_limit):
    """Mean BCE(M rows in order, G rows permuted per-batch by tgt_flat)."""
    B, K, Np = Mf.shape
    itemsize = jnp.dtype(Mf.dtype).itemsize
    per_batch = max(K * Np * itemsize, 1)
    bt = max(1, min(B, target_bytes // per_batch))
    while B % bt:                 # whole batches per block (permutation stays
        bt -= 1                   # block-local); worst case = 1 full batch/step
    if bt == B and B > 1:         # >=2 grid steps so v7x's two TCs both work
        bt = max(d for d in range(1, B) if B % d == 0)
    nblk = B // bt

    psums = pl.pallas_call(
        _bce_block_kernel,
        out_shape=jax.ShapeDtypeStruct((nblk, 1, Np), jnp.float32),
        grid_spec=pltpu.PrefetchScalarGridSpec(
            num_scalar_prefetch=1,
            grid=(nblk,),
            in_specs=[
                pl.BlockSpec((bt, K, Np), lambda b, tgt: (b, 0, 0)),
                pl.BlockSpec((bt, K, Np), lambda b, tgt: (b, 0, 0)),
            ],
            out_specs=pl.BlockSpec((1, 1, Np), lambda b, tgt: (b, 0, 0)),
        ),
        compiler_params=pltpu.CompilerParams(
            dimension_semantics=("parallel",),
            vmem_limit_bytes=vmem_limit,
        ),
    )(tgt_flat, Mf, Gf)
    # Tiny final reduce + mean on the lane-dense partial-sum slab.
    return jnp.sum(psums) / jnp.float32(B * K * n_valid)


# ---------------------------------------------------------------------------
# Host-side Hungarian matching on the tiny (K, K) cost matrices.
# ---------------------------------------------------------------------------
def _linear_sum_assignment(cost):
    if _scipy_lsa is not None:
        i_idx, j_idx = _scipy_lsa(cost)
        return np.asarray(i_idx), np.asarray(j_idx)
    k = cost.shape[0]
    if k > 9:
        raise RuntimeError("brute-force matching needs scipy for K > 9")
    best_perm, best_cost = None, None
    for perm in itertools.permutations(range(k)):
        tot = float(sum(cost[i, p] for i, p in enumerate(perm)))
        if best_cost is None or tot < best_cost:
            best_cost, best_perm = tot, perm
    return np.arange(k, dtype=np.int64), np.asarray(best_perm, dtype=np.int64)


# ---------------------------------------------------------------------------
# Full forward: mirrors gazeLoss.forward(M, G)
# ---------------------------------------------------------------------------
def gaze_loss(M, G):
    """Returns (loss, (cost, tgt)); tgt[b*K + i] = matched G row within batch b."""
    B, K, W, H = M.shape
    N = W * H
    M = jnp.asarray(M)
    G = jnp.asarray(G)
    if not jnp.issubdtype(M.dtype, jnp.floating):
        M = M.astype(jnp.float32)
    if not jnp.issubdtype(G.dtype, jnp.floating):
        G = G.astype(jnp.float32)
    # Keep the input dtype through HBM (bf16 inputs halve the mem-bound cost
    # kernel's DMA volume); kernels upcast to f32 in-register.
    Mf = M.reshape(B, K, N)
    Gf = G.reshape(B, K, N)

    # Lane-densify small spatial maps (7x7, 14x14, ...): pad N to a multiple of
    # 128.  Zeros contribute 0 to the L1 cost and 0 to the clamped BCE terms;
    # the BCE mean divisor stays B*K*N.
    Np = ((N + _LANE - 1) // _LANE) * _LANE
    if Np != N:
        Mf = jnp.pad(Mf, ((0, 0), (0, 0), (0, Np - N)))
        Gf = jnp.pad(Gf, ((0, 0), (0, 0), (0, Np - N)))

    target_bytes, vmem_limit = _vmem_plan()

    # 1) per-batch K x K cost matrices on TPU.
    cost = _pairwise_l1_cost(Mf, Gf, target_bytes, vmem_limit)

    # 2) Hungarian matching on host.
    # TODO(synk): linear_sum_assignment has no Pallas equivalent; it runs on
    # host exactly like the PyTorch module (.cpu() + scipy), putting one
    # device->host sync on the critical path between the two kernels.
    cost_np = np.asarray(jax.device_get(cost))
    tgt = np.empty((B, K), dtype=np.int32)
    for b in range(B):
        i_idx, j_idx = _linear_sum_assignment(cost_np[b])
        order = np.argsort(i_idx)        # arange for square costs; be safe
        tgt[b] = j_idx[order]
    tgt_flat = jnp.asarray(tgt.reshape(-1), dtype=jnp.int32)

    # 3) BCE(mean) on TPU; M rows are already in matched order (Hungarian row
    # indices of a square cost are arange), the G permutation is applied
    # in-VMEM inside the kernel via scalar-prefetched indices.
    loss = _bce_mean_matched(Mf, Gf, tgt_flat, n_valid=N,
                             target_bytes=target_bytes, vmem_limit=vmem_limit)
    return loss, (cost, tgt_flat)


if __name__ == "__main__":
    key = jax.random.PRNGKey(0)
    kM, kG = jax.random.split(key)
    B, K, W, H = 2, 4, 16, 16
    N = W * H

    # maps in (0, 1), bounded away from {0, 1} like the module assumes
    M = jax.random.uniform(kM, (B, K, W, H), jnp.float32, minval=0.05, maxval=0.95)
    G = jax.random.uniform(kG, (B, K, W, H), jnp.float32, minval=0.05, maxval=0.95)

    loss, (cost, tgt) = gaze_loss(M, G)
    loss = jax.block_until_ready(loss)

    # ---- reference checks (numpy) -------------------------------------
    Mn = np.asarray(M).reshape(B, K, N).astype(np.float32)
    Gn = np.asarray(G).reshape(B, K, N).astype(np.float32)

    # cost kernel vs dense numpy cdist (diagonal blocks)
    cost_ref = np.abs(Mn[:, :, None, :] - Gn[:, None, :, :]).sum(-1)
    np.testing.assert_allclose(np.asarray(cost), cost_ref, rtol=1e-4, atol=1e-3)

    # matched BCE (using the same matching the kernel path used)
    tgt_np = np.asarray(jax.device_get(tgt)).reshape(B, K)
    M_sel = Mn.reshape(B * K, N)
    G_sel = Gn[np.arange(B)[:, None], tgt_np].reshape(B * K, N)
    log_m = np.maximum(np.log(M_sel), -100.0)
    log_1m = np.maximum(np.log(1.0 - M_sel), -100.0)
    loss_ref = np.mean(-(G_sel * log_m + (1.0 - G_sel) * log_1m))
    np.testing.assert_allclose(float(loss), loss_ref, rtol=1e-4, atol=1e-5)

    print("KERNEL_OK")
</pallas_src>

<mosaic_0001>
module attributes {stable_mosaic.version = 11 : i64} {
  func.func @_cost_kernel(%arg0: i32, %arg1: memref<1x4x256xf32, #tpu.memory_space<vmem>>, %arg2: memref<1x4x256xf32, #tpu.memory_space<vmem>>, %arg3: memref<1x4x4xf32, #tpu.memory_space<vmem>>) attributes {dimension_semantics = [#tpu.dimension_semantics<parallel>], iteration_bounds = array<i64: 2>, scalar_prefetch = 0 : i64, scratch_operands = 0 : i64, tpu.core_type = #tpu.core_type<tc>, window_params = [{transform_indices = @transform_0, window_bounds = array<i64: 1, 4, 256>}, {transform_indices = @transform_1, window_bounds = array<i64: 1, 4, 256>}, {transform_indices = @transform_2, window_bounds = array<i64: 1, 4, 4>}]} {
    %c0 = arith.constant 0 : index
    %c0_0 = arith.constant 0 : index
    %c0_1 = arith.constant 0 : index
    %0 = vector.load %arg2[%c0, %c0_0, %c0_1] : memref<1x4x256xf32, #tpu.memory_space<vmem>>, vector<1x4x256xf32>
    %c0_2 = arith.constant 0 : index
    %c0_3 = arith.constant 0 : index
    %c0_4 = arith.constant 0 : index
    %1 = vector.load %arg1[%c0_2, %c0_3, %c0_4] : memref<1x4x256xf32, #tpu.memory_space<vmem>>, vector<1x1x256xf32>
    %2 = vector.broadcast %1 : vector<1x1x256xf32> to vector<1x4x256xf32>
    %3 = arith.subf %2, %0 : vector<1x4x256xf32>
    %4 = math.absf %3 : vector<1x4x256xf32>
    %cst = arith.constant dense<0.000000e+00> : vector<1x4xf32>
    %5 = vector.multi_reduction <add>, %4, %cst [2] : vector<1x4x256xf32> to vector<1x4xf32>
    %6 = vector.shape_cast %5 : vector<1x4xf32> to vector<1x1x4xf32>
    %c0_5 = arith.constant 0 : index
    %c0_6 = arith.constant 0 : index
    %c0_7 = arith.constant 0 : index
    %7 = vector.load %arg3[%c0_5, %c0_6, %c0_7] : memref<1x4x4xf32, #tpu.memory_space<vmem>>, vector<1x1x4xf32>
    tpu.vector_store %arg3[%c0_5, %c0_6, %c0_7], %6 {strides = array<i32>} : memref<1x4x4xf32, #tpu.memory_space<vmem>>, vector<1x1x4xf32>,
    %c0_8 = arith.constant 0 : index
    %c1 = arith.constant 1 : index
    %c0_9 = arith.constant 0 : index
    %8 = vector.load %arg1[%c0_8, %c1, %c0_9] : memref<1x4x256xf32, #tpu.memory_space<vmem>>, vector<1x1x256xf32>
    %9 = vector.broadcast %8 : vector<1x1x256xf32> to vector<1x4x256xf32>
    %10 = arith.subf %9, %0 : vector<1x4x256xf32>
    %11 = math.absf %10 : vector<1x4x256xf32>
    %cst_10 = arith.constant dense<0.000000e+00> : vector<1x4xf32>
    %12 = vector.multi_reduction <add>, %11, %cst_10 [2] : vector<1x4x256xf32> to vector<1x4xf32>
    %13 = vector.shape_cast %12 : vector<1x4xf32> to vector<1x1x4xf32>
    %c0_11 = arith.constant 0 : index
    %c1_12 = arith.constant 1 : index
    %c0_13 = arith.constant 0 : index
    %14 = vector.load %arg3[%c0_11, %c1_12, %c0_13] : memref<1x4x4xf32, #tpu.memory_space<vmem>>, vector<1x1x4xf32>
    tpu.vector_store %arg3[%c0_11, %c1_12, %c0_13], %13 {strides = array<i32>} : memref<1x4x4xf32, #tpu.memory_space<vmem>>, vector<1x1x4xf32>,
    %c0_14 = arith.constant 0 : index
    %c2 = arith.constant 2 : index
    %c0_15 = arith.constant 0 : index
    %15 = vector.load %arg1[%c0_14, %c2, %c0_15] : memref<1x4x256xf32, #tpu.memory_space<vmem>>, vector<1x1x256xf32>
    %16 = vector.broadcast %15 : vector<1x1x256xf32> to vector<1x4x256xf32>
    %17 = arith.subf %16, %0 : vector<1x4x256xf32>
    %18 = math.absf %17 : vector<1x4x256xf32>
    %cst_16 = arith.constant dense<0.000000e+00> : vector<1x4xf32>
    %19 = vector.multi_reduction <add>, %18, %cst_16 [2] : vector<1x4x256xf32> to vector<1x4xf32>
    %20 = vector.shape_cast %19 : vector<1x4xf32> to vector<1x1x4xf32>
    %c0_17 = arith.constant 0 : index
    %c2_18 = arith.constant 2 : index
    %c0_19 = arith.constant 0 : index
    %21 = vector.load %arg3[%c0_17, %c2_18, %c0_19] : memref<1x4x4xf32, #tpu.memory_space<vmem>>, vector<1x1x4xf32>
    tpu.vector_store %arg3[%c0_17, %c2_18, %c0_19], %20 {strides = array<i32>} : memref<1x4x4xf32, #tpu.memory_space<vmem>>, vector<1x1x4xf32>,
    %c0_20 = arith.constant 0 : index
    %c3 = arith.constant 3 : index
    %c0_21 = arith.constant 0 : index
    %22 = vector.load %arg1[%c0_20, %c3, %c0_21] : memref<1x4x256xf32, #tpu.memory_space<vmem>>, vector<1x1x256xf32>
    %23 = vector.broadcast %22 : vector<1x1x256xf32> to vector<1x4x256xf32>
    %24 = arith.subf %23, %0 : vector<1x4x256xf32>
    %25 = math.absf %24 : vector<1x4x256xf32>
    %cst_22 = arith.constant dense<0.000000e+00> : vector<1x4xf32>
    %26 = vector.multi_reduction <add>, %25, %cst_22 [2] : vector<1x4x256xf32> to vector<1x4xf32>
    %27 = vector.shape_cast %26 : vector<1x4xf32> to vector<1x1x4xf32>
    %c0_23 = arith.constant 0 : index
    %c3_24 = arith.constant 3 : index
    %c0_25 = arith.constant 0 : index
    %28 = vector.load %arg3[%c0_23, %c3_24, %c0_25] : memref<1x4x4xf32, #tpu.memory_space<vmem>>, vector<1x1x4xf32>
    tpu.vector_store %arg3[%c0_23, %c3_24, %c0_25], %27 {strides = array<i32>} : memref<1x4x4xf32, #tpu.memory_space<vmem>>, vector<1x1x4xf32>,
    return
  }
  func.func @transform_0(%arg0: i32) -> (i32, i32, i32) {
    %c0_i32 = arith.constant 0 : i32
    %c0_i32_0 = arith.constant 0 : i32
    %c0_i32_1 = arith.constant 0 : i32
    return %arg0, %c0_i32, %c0_i32_0 : i32, i32, i32
  }
  func.func @transform_1(%arg0: i32) -> (i32, i32, i32) {
    %c0_i32 = arith.constant 0 : i32
    %c0_i32_0 = arith.constant 0 : i32
    %c0_i32_1 = arith.constant 0 : i32
    return %arg0, %c0_i32, %c0_i32_0 : i32, i32, i32
  }
  func.func @transform_2(%arg0: i32) -> (i32, i32, i32) {
    %c0_i32 = arith.constant 0 : i32
    %c0_i32_0 = arith.constant 0 : i32
    %c0_i32_1 = arith.constant 0 : i32
    return %arg0, %c0_i32, %c0_i32_0 : i32, i32, i32
  }
}

</mosaic_0001>

<llo_original>
// kernel: tpu_custom_call.1
$region0: #{tpu_custom_call.1}
  #allocation0 [shape = 'u32[]', space=smem, size = 0x4, offset = 0x4, fixed_abs, tag = 'smem constant byte address 0x4 - core index']
  #allocation1 [shape = 'u32[144,128]{1,0:T(1,128)}', space=vmem, size = 0x12000, scoped, tag = 'internal scratch']
  %s0 = inlined_call_operand.hbm [shape: f32[2,4,256], index: 0, kind: input, shape index: {}]
  %s1 = inlined_call_operand.hbm [shape: f32[2,4,256], index: 1, kind: input, shape index: {}]
  %s2 = inlined_call_operand.hbm [shape: f32[2,4,4], index: 2, kind: output, shape index: {}]
  %s3 = sld [smem:[#allocation0]]
  $region49: #{tpu_custom_call.1} parent=0
    _
  %s5 = ssub.s32 1, %s3
  %s6 = scalar_select 0, %s5, %s3
  $region1: #{tpu_custom_call.1} parent=0
    #allocation2 [shape = 'u8[8192]{0}', space=vmem, size = 0x2000, scoped, tag = 'input window, operand 0']
    #allocation3 [shape = 's32[2]{0}', space=sflag, size = 0x8, scoped, tag = 'scoped memory for tpu_custom_call.1']
    #allocation4 [shape = 's32[2]{0}', space=sflag, size = 0x8, scoped, tag = 'scoped memory for tpu_custom_call.1']
    #allocation5 [shape = 'u8[8192]{0}', space=vmem, size = 0x2000, scoped, tag = 'input window, operand 1']
    #allocation6 [shape = 's32[2]{0}', space=sflag, size = 0x8, scoped, tag = 'scoped memory for tpu_custom_call.1']
    #allocation7 [shape = 'u8[4096]{0}', space=vmem, size = 0x1000, scoped, tag = 'output window, operand 0']
    %7 = vsyncpa [#allocation3], 0
    %s8 = scalar_lea.sflag [#allocation3], 1
    %9 = vsyncpa %s8, 0
    %10 = vsyncpa [#allocation6], 0
    %s11 = scalar_lea.sflag [#allocation6], 1
    %12 = vsyncpa %s11, 0
    %13 = vsyncpa [#allocation4], 0
    %s14 = scalar_lea.sflag [#allocation4], 1
    %15 = vsyncpa %s14, 0
    loop: start=0, step=1, limit=4
    $region2: #{tpu_custom_call.1} parent=1 // loop_pre_header
      _
    $region3: #{tpu_custom_call.1} parent=1 // loop_header
      %s17 = sphi 0, %s21
      %p18 = scmp.ge.s32.totalorder %s17, 4
      %s27 = sphi 0, %s29
      %s30 = sphi 0, %s27
      %s31 = sphi 0, %s30
      %s47 = sphi 0, %s31
      %s53 = sphi 0, %s55
      %s56 = sphi 0, %s53
      %s57 = sphi 0, %s56
      %s73 = sphi 0, %s57
      %s79 = sphi 0, %s81
      %s82 = sphi 0, %s79
      %s83 = sphi 0, %s82
      %s99 = sphi 0, %s83
    $region4: #{tpu_custom_call.1} parent=1 // loop_header_branch
      %20 = sbr.rel (%p18) target = $region8
    $region5: #{tpu_custom_call.1} parent=1 // loop_body
      %s22 = ssub.s32 %s17, 1
      %s23 = ssub.s32 %s17, 2
      %s24 = sadd.s32 %s17, 1
      %s25 = ssub.s32 %s17, %s24
      %p26 = scmp.eq.s32.totalorder %s25, 0
      %s28 = sadd.s32 %s27, 1
      %s29 = scalar_select %p26, %s27, %s28
      %p32 = pneg %p26
      %p33 = scmp.eq.s32.totalorder %s17, 1
      %p34 = por %p32, %p33
      %p35 = scmp.ne.s32.totalorder %s27, %s30
      %p36 = scmp.eq.s32.totalorder %s17, 0
      %p37 = por %p35, %p36
      %p38 = scmp.ne.s32.totalorder %s27, %s30
      %p39 = scmp.eq.s32.totalorder %s22, 1
      %p40 = por %p38, %p39
      %p41 = scmp.ne.s32.totalorder %s30, %s31
      %p42 = scmp.eq.s32.totalorder %s22, 0
      %p43 = por %p41, %p42
      %p44 = scmp.ne.s32.totalorder %s30, %s31
      %p45 = scmp.eq.s32.totalorder %s23, 1
      %p46 = por %p44, %p45
      %p48 = scmp.ne.s32.totalorder %s31, %s47
      %p49 = scmp.eq.s32.totalorder %s23, 0
      %p50 = por %p48, %p49
      %s51 = ssub.s32 %s17, %s24
      %p52 = scmp.eq.s32.totalorder %s51, 0
      %s54 = sadd.s32 %s53, 1
      %s55 = scalar_select %p52, %s53, %s54
      %p58 = pneg %p52
      %p59 = scmp.eq.s32.totalorder %s17, 1
      %p60 = por %p58, %p59
      %p61 = scmp.ne.s32.totalorder %s53, %s56
      %p62 = scmp.eq.s32.totalorder %s17, 0
      %p63 = por %p61, %p62
      %p64 = scmp.ne.s32.totalorder %s53, %s56
      %p65 = scmp.eq.s32.totalorder %s22, 1
      %p66 = por %p64, %p65
      %p67 = scmp.ne.s32.totalorder %s56, %s57
      %p68 = scmp.eq.s32.totalorder %s22, 0
      %p69 = por %p67, %p68
      %p70 = scmp.ne.s32.totalorder %s56, %s57
      %p71 = scmp.eq.s32.totalorder %s23, 1
      %p72 = por %p70, %p71
      %p74 = scmp.ne.s32.totalorder %s57, %s73
      %p75 = scmp.eq.s32.totalorder %s23, 0
      %p76 = por %p74, %p75
      %s77 = ssub.s32 %s17, %s24
      %p78 = scmp.eq.s32.totalorder %s77, 0
      %s80 = sadd.s32 %s79, 1
      %s81 = scalar_select %p78, %s79, %s80
      %p84 = pneg %p78
      %p85 = scmp.eq.s32.totalorder %s17, 1
      %p86 = por %p84, %p85
      %p87 = scmp.ne.s32.totalorder %s79, %s82
      %p88 = scmp.eq.s32.totalorder %s17, 0
      %p89 = por %p87, %p88
      %p90 = scmp.ne.s32.totalorder %s79, %s82
      %p91 = scmp.eq.s32.totalorder %s22, 1
      %p92 = por %p90, %p91
      %p93 = scmp.ne.s32.totalorder %s82, %s83
      %p94 = scmp.eq.s32.totalorder %s22, 0
      %p95 = por %p93, %p94
      %p96 = scmp.ne.s32.totalorder %s82, %s83
      %p97 = scmp.eq.s32.totalorder %s23, 1
      %p98 = por %p96, %p97
      %p100 = scmp.ne.s32.totalorder %s83, %s99
      %p101 = scmp.eq.s32.totalorder %s23, 0
      %p102 = por %p100, %p101
      %p103 = scmp.le.s32.totalorder 1, %s17
      %p104 = scmp.lt.s32.totalorder %s17, 3
      %p105 = pnand %p103, %p104
      %p106 = pneg %p105
      // Predicated region
      $region9: #{tpu_custom_call.1} parent=5 // pred_check
        _
      $region10: #{tpu_custom_call.1} parent=5 // pred_check_branch
        %108 = sbr.rel (%p105) target = $region12
      $region11: #{tpu_custom_call.1} parent=5 // pred_region
        %s109 = ssub.s32 %s17, 1
      $region12: #{tpu_custom_call.1} parent=5 // pred_fallthru
        _
      %p110 = scmp.lt.s32.totalorder %s17, 2
      // Predicated region
      $region13: #{tpu_custom_call.1} parent=5 // pred_check
        %p111 = pneg %p110
      $region14: #{tpu_custom_call.1} parent=5 // pred_check_branch
        %113 = sbr.rel (%p111) target = $region16
      $region15: #{tpu_custom_call.1} parent=5 // pred_region
        // Predicated region
        $region17: #{tpu_custom_call.1} parent=15 // pred_check
          %p114 = pneg %p37
        $region18: #{tpu_custom_call.1} parent=15 // pred_check_branch
          %116 = sbr.rel (%p114) target = $region20
        $region19: #{tpu_custom_call.1} parent=15 // pred_region
          %s117 = sand.u32 %s27, 1
          %s118 = scalar_lea.sflag [#allocation3], %s117
          %s119 = sand.u32 %s27, 1
          %s120 = smul.addr %s119, 8
          %s121 = scalar_lea.vmem [#allocation2], %s120
          %s123 = ssub.s32 128, 128
          %124 = vsyncadd %s118, %s123
          %s125 = smul.addr %s17, 2
          %s126 = smul.addr %s125, 64
          %s127 = scalar_lea.hbm %s0, %s126
          %s129 = sshll.u32 %s121, 4
          %s130 = int_to_ptr.vmem [resolvable:$true] %s129
          %132 = dma.hbm_to_vmem [thread:$0]  %s127, 128, %s130, %s118
        $region20: #{tpu_custom_call.1} parent=15 // pred_fallthru
          _
        // Predicated region
        $region21: #{tpu_custom_call.1} parent=15 // pred_check
          %p133 = pneg %p63
        $region22: #{tpu_custom_call.1} parent=15 // pred_check_branch
          %135 = sbr.rel (%p133) target = $region24
        $region23: #{tpu_custom_call.1} parent=15 // pred_region
          %s136 = sand.u32 %s53, 1
          %s137 = scalar_lea.sflag [#allocation6], %s136
          %s138 = sand.u32 %s53, 1
          %s139 = smul.addr %s138, 8
          %s140 = scalar_lea.vmem [#allocation5], %s139
          %s142 = ssub.s32 128, 128
          %143 = vsyncadd %s137, %s142
          %s144 = smul.addr %s17, 2
          %s145 = smul.addr %s144, 64
          %s146 = scalar_lea.hbm %s1, %s145
          %s148 = sshll.u32 %s140, 4
          %s149 = int_to_ptr.vmem [resolvable:$true] %s148
          %151 = dma.hbm_to_vmem [thread:$0]  %s146, 128, %s149, %s137
        $region24: #{tpu_custom_call.1} parent=15 // pred_fallthru
          _
      $region16: #{tpu_custom_call.1} parent=5 // pred_fallthru
        _
      %p152 = scmp.le.s32.totalorder 1, %s17
      %p153 = scmp.lt.s32.totalorder %s17, 3
      %p154 = pnand %p152, %p153
      %p155 = pneg %p154
      // Predicated region
      $region25: #{tpu_custom_call.1} parent=5 // pred_check
        _
      $region26: #{tpu_custom_call.1} parent=5 // pred_check_branch
        %157 = sbr.rel (%p154) target = $region28
      $region27: #{tpu_custom_call.1} parent=5 // pred_region
        %s158 = ssub.s32 %s17, 1
        %s159 = sand.u32 %s30, 1
        %s160 = scalar_lea.sflag [#allocation3], %s159
        %s161 = sand.u32 %s30, 1
        %s162 = smul.addr %s161, 8
        %s163 = scalar_lea.vmem [#allocation2], %s162
        // Predicated region
        $region29: #{tpu_custom_call.1} parent=27 // pred_check
          %p164 = pneg %p43
        $region30: #{tpu_custom_call.1} parent=27 // pred_check_branch
          %166 = sbr.rel (%p164) target = $region32
        $region31: #{tpu_custom_call.1} parent=27 // pred_region
          %167 = dma.done %s160, 128
        $region32: #{tpu_custom_call.1} parent=27 // pred_fallthru
          _
        %s168 = sand.u32 %s56, 1
        %s169 = scalar_lea.sflag [#allocation6], %s168
        %s170 = sand.u32 %s56, 1
        %s171 = smul.addr %s170, 8
        %s172 = scalar_lea.vmem [#allocation5], %s171
        // Predicated region
        $region33: #{tpu_custom_call.1} parent=27 // pred_check
          %p173 = pneg %p69
        $region34: #{tpu_custom_call.1} parent=27 // pred_check_branch
          %175 = sbr.rel (%p173) target = $region36
        $region35: #{tpu_custom_call.1} parent=27 // pred_region
          %176 = dma.done %s169, 128
        $region36: #{tpu_custom_call.1} parent=27 // pred_fallthru
          _
        %s177 = sand.u32 %s30, 1
        %s178 = scalar_lea.sflag [#allocation3], %s177
        %s179 = sand.u32 %s30, 1
        %s180 = smul.addr %s179, 8
        %s181 = scalar_lea.vmem [#allocation2], %s180
        %p182 = pneg %p43
        %p183 = pneg %p40
        %s184 = sand.u32 %s56, 1
        %s185 = scalar_lea.sflag [#allocation6], %s184
        %s186 = sand.u32 %s56, 1
        %s187 = smul.addr %s186, 8
        %s188 = scalar_lea.vmem [#allocation5], %s187
        %p189 = pneg %p69
        %p190 = pneg %p66
        %p191 = pneg %p95
        %p192 = pneg %p92
        %s193 = sand.u32 %s82, 1
        %s194 = scalar_lea.sflag [#allocation4], %s193
        %s195 = sand.u32 %s82, 1
        %s196 = smul.addr %s195, 4
        %s197 = scalar_lea.vmem [#allocation7], %s196
        %v198 = vld [vmem:[%s172] sm:$0xff]
        %v199 = vld [vmem:[%s163] ss:$4 sm:$0x3]
        %v201 = vlaneseq
        %v202 = vshrl.u32 %v201, 7
        %v203 = vsub.s32 0, %v202
        %v204 = vrot.slane %v199, %v203
        %v205 = vlaneseq
        %v206 = vshrl.u32 %v205, 7
        %v207 = vsub.s32 1, %v206
        %v208 = vrot.slane %v199, %v207
        %v212 = vcombine.high %v198, %v198
        %v214 = vsub.f32 %v204, %v198
        %v215 = vsub.f32 %v208, %v212
        %v216 = vand.u32 2147483647, %v214
        %v217 = vand.u32 2147483647, %v215
        %vm218 = vcmask 1043456
        %v219 = vsel %vm218, %v216, 0.0
        %v220 = vsel %vm218, %v217, 0.0
        %v221 = vadd.f32 %v219, %v220
        %222 = vadd.xlane.f32.xlu0 %v221
        %v223 = vpop.xlane.xlu0 %222
        %v225 = vlaneseq
        %v226 = vand.u32 %v225, 127
        %v227 = vlaneseq
        %v228 = vshrl.u32 %v227, 7
        %v229 = vsub.s32 %v226, %v228
        %v230 = vrot.slane %v223, %v229
        %vm232 = vcmask 24576
        %233 = vst.msk [vmem:[%s197] sm:$0x1] %vm232, %v230
        %s234 = scalar_lea.vmem %s163, 1 [#allocation2]
        %v235 = vld [vmem:[%s234] ss:$4 sm:$0x3]
        %v237 = vlaneseq
        %v238 = vshrl.u32 %v237, 7
        %v239 = vsub.s32 0, %v238
        %v240 = vrot.slane %v235, %v239
        %v241 = vlaneseq
        %v242 = vshrl.u32 %v241, 7
        %v243 = vsub.s32 1, %v242
        %v244 = vrot.slane %v235, %v243
        %v247 = vsub.f32 %v240, %v198
        %v248 = vsub.f32 %v244, %v212
        %v249 = vand.u32 2147483647, %v247
        %v250 = vand.u32 2147483647, %v248
        %v251 = vsel %vm218, %v249, 0.0
        %v252 = vsel %vm218, %v250, 0.0
        %v253 = vadd.f32 %v251, %v252
        %254 = vadd.xlane.f32.xlu0 %v253
        %v255 = vpop.xlane.xlu0 %254
        %v257 = vlaneseq
        %v258 = vshrl.u32 %v257, 7
        %v259 = vsub.s32 %v226, %v258
        %v260 = vrot.slane %v255, %v259
        %262 = vst.msk [vmem:[%s197 + $0x1] sm:$0x1] %vm232, %v260
        %s263 = scalar_lea.vmem %s163, 2 [#allocation2]
        %v264 = vld [vmem:[%s263] ss:$4 sm:$0x3]
        %v266 = vlaneseq
        %v267 = vshrl.u32 %v266, 7
        %v268 = vsub.s32 0, %v267
        %v269 = vrot.slane %v264, %v268
        %v270 = vlaneseq
        %v271 = vshrl.u32 %v270, 7
        %v272 = vsub.s32 1, %v271
        %v273 = vrot.slane %v264, %v272
        %v276 = vsub.f32 %v269, %v198
        %v277 = vsub.f32 %v273, %v212
        %v278 = vand.u32 2147483647, %v276
        %v279 = vand.u32 2147483647, %v277
        %v280 = vsel %vm218, %v278, 0.0
        %v281 = vsel %vm218, %v279, 0.0
        %v282 = vadd.f32 %v280, %v281
        %283 = vadd.xlane.f32.xlu0 %v282
        %v284 = vpop.xlane.xlu0 %283
        %v286 = vlaneseq
        %v287 = vshrl.u32 %v286, 7
        %v288 = vsub.s32 %v226, %v287
        %v289 = vrot.slane %v284, %v288
        %291 = vst.msk [vmem:[%s197 + $0x2] sm:$0x1] %vm232, %v289
        %s292 = scalar_lea.vmem %s163, 3 [#allocation2]
        %v293 = vld [vmem:[%s292] ss:$4 sm:$0x3]
        %v295 = vlaneseq
        %v296 = vshrl.u32 %v295, 7
        %v297 = vsub.s32 0, %v296
        %v298 = vrot.slane %v293, %v297
        %v299 = vlaneseq
        %v300 = vshrl.u32 %v299, 7
        %v301 = vsub.s32 1, %v300
        %v302 = vrot.slane %v293, %v301
        %v305 = vsub.f32 %v298, %v198
        %v306 = vsub.f32 %v302, %v212
        %v307 = vand.u32 2147483647, %v305
        %v308 = vand.u32 2147483647, %v306
        %v309 = vsel %vm218, %v307, 0.0
        %v310 = vsel %vm218, %v308, 0.0
        %v311 = vadd.f32 %v309, %v310
        %312 = vadd.xlane.f32.xlu0 %v311
        %v313 = vpop.xlane.xlu0 %312
        %v315 = vlaneseq
        %v316 = vshrl.u32 %v315, 7
        %v317 = vsub.s32 %v226, %v316
        %v318 = vrot.slane %v313, %v317
        %320 = vst.msk [vmem:[%s197 + $0x3] sm:$0x1] %vm232, %v318
        %s321 = sand.u32 %s82, 1
        %s322 = scalar_lea.sflag [#allocation4], %s321
        %s323 = sand.u32 %s82, 1
        %s324 = smul.addr %s323, 4
        %s325 = scalar_lea.vmem [#allocation7], %s324
        // Predicated region
        $region37: #{tpu_custom_call.1} parent=27 // pred_check
          %p326 = pneg %p92
        $region38: #{tpu_custom_call.1} parent=27 // pred_check_branch
          %328 = sbr.rel (%p326) target = $region40
        $region39: #{tpu_custom_call.1} parent=27 // pred_region
          %s330 = ssub.s32 64, 64
          %331 = vsyncadd %s322, %s330
          %s332 = smul.addr %s22, 64
          %s333 = scalar_lea.hbm %s2, %s332
          %s335 = sshll.u32 %s325, 4
          %s336 = int_to_ptr.vmem [resolvable:$true] %s335
          %338 = dma.vmem_to_hbm [thread:$0]  %s336, 64, %s333, %s322
        $region40: #{tpu_custom_call.1} parent=27 // pred_fallthru
          _
      $region28: #{tpu_custom_call.1} parent=5 // pred_fallthru
        _
      %p339 = scmp.le.s32.totalorder 2, %s17
      // Predicated region
      $region41: #{tpu_custom_call.1} parent=5 // pred_check
        %p340 = pneg %p339
      $region42: #{tpu_custom_call.1} parent=5 // pred_check_branch
        %342 = sbr.rel (%p340) target = $region44
      $region43: #{tpu_custom_call.1} parent=5 // pred_region
        %s343 = ssub.s32 %s17, 2
        // Predicated region
        $region45: #{tpu_custom_call.1} parent=43 // pred_check
          %p344 = pneg %p98
        $region46: #{tpu_custom_call.1} parent=43 // pred_check_branch
          %346 = sbr.rel (%p344) target = $region48
        $region47: #{tpu_custom_call.1} parent=43 // pred_region
          %s347 = sand.u32 %s83, 1
          %s348 = scalar_lea.sflag [#allocation4], %s347
          %s349 = sand.u32 %s83, 1
          %s350 = smul.addr %s349, 4
          %s351 = scalar_lea.vmem [#allocation7], %s350
          %352 = dma.done %s348, 64
        $region48: #{tpu_custom_call.1} parent=43 // pred_fallthru
          _
      $region44: #{tpu_custom_call.1} parent=5 // pred_fallthru
        _
    $region6: #{tpu_custom_call.1} parent=1 // loop_footer
      %s21 = sadd.s32 1, %s17
    $region7: #{tpu_custom_call.1} parent=1 // loop_footer_branch
      %16 = sbr.rel target = $region3
    $region8: #{tpu_custom_call.1} parent=1 // loop_exit
      _
    %353 = vsyncpa [#allocation3], 1
    %s354 = scalar_lea.sflag [#allocation3], 1
    %355 = vsyncpa %s354, 1
    %356 = vsyncpa [#allocation6], 1
    %s357 = scalar_lea.sflag [#allocation6], 1
    %358 = vsyncpa %s357, 1
    %359 = vsyncpa [#allocation4], 1
    %s360 = scalar_lea.sflag [#allocation4], 1
    %361 = vsyncpa %s360, 1

</llo_original>
